<compile_context>
chip_gen: v7x
topology: tpu7x:2x2x1
jax: 0.10.0
libtpu: 0.0.40
codegen_flags: <defaults>
</compile_context>

<pallas_src>
import math
import functools

import jax
import jax.numpy as jnp
from jax.experimental import pallas as pl
from jax.experimental.pallas import tpu as pltpu

_INV_SQRT2 = 0.7071067811865476        # 1/sqrt(2)
_SQRT_2_OVER_PI = 0.7978845608028654   # sqrt(2/pi), for tanh-GELU


def _transform_kernel(x_ref, w_ref, b_ref, gamma_ref, beta_ref, o_ref, *,
                      eps, inv_h, sub_rows, n_sub, act):
    # x_ref: (block_rows, H) native dtype; w_ref: (H, H) native dtype (resident)
    # b/gamma/beta: (1, H) f32; o_ref: (block_rows, H)
    w = w_ref[...]
    b = b_ref[...]
    g = gamma_ref[...]
    be = beta_ref[...]

    def body(j, carry):
        r0 = pl.multiple_of(j * sub_rows, sub_rows)
        xs = x_ref[pl.ds(r0, sub_rows), :]

        # MXU matmul in input dtype (bf16 fast path) with f32 accumulation.
        h = jnp.dot(xs, w, preferred_element_type=jnp.float32) + b

        if act == "gelu":          # erf-GELU: matches the PyTorch reference.
            h = h * 0.5 * (1.0 + jax.lax.erf(h * _INV_SQRT2))
        elif act == "gelu_tanh":   # approximate GELU: single EUP tanh.
            h = 0.5 * h * (1.0 + jnp.tanh(_SQRT_2_OVER_PI * (h + 0.044715 * h * h * h)))
        elif act == "relu":
            h = jnp.maximum(h, 0.0)
        else:                      # resolved at trace time (act is static).
            raise ValueError(f"unsupported activation: {act}")

        # LayerNorm over hidden axis (biased variance, eps inside rsqrt).
        # Single pass: var = E[h^2] - mean^2, guarded against round-off.
        mean = jnp.sum(h, axis=-1, keepdims=True) * inv_h
        ex2 = jnp.sum(h * h, axis=-1, keepdims=True) * inv_h
        var = jnp.maximum(ex2 - mean * mean, 0.0)
        normed = (h - mean) * jax.lax.rsqrt(var + eps)

        o_ref[pl.ds(r0, sub_rows), :] = (normed * g + be).astype(o_ref.dtype)
        return carry

    # Unrolled sub-tile loop: matmul of sub-tile j+1 is data-independent of the
    # VALU/EUP epilogue of sub-tile j, so the scheduler can overlap them.
    jax.lax.fori_loop(0, n_sub, body, 0, unroll=True)


def _vmem_capacity_bytes():
    try:
        return int(pltpu.get_tpu_info().vmem_capacity_bytes)
    except Exception:
        return 64 * 1024 * 1024   # conservative per-core default (v7x)


def _round_up(v, m):
    return ((v + m - 1) // m) * m


def bert_prediction_head_transform(x, weight, bias, gamma, beta, *, eps=1e-12,
                                   act="gelu", block_rows=None,
                                   compute_dtype=None, weight_is_transposed=False):
    """Fused dense + GELU + LayerNorm (BertPredictionHeadTransform.forward).

    x: (..., H).  weight: (H_out, H_in) in PyTorch nn.Linear convention, or
    (H_in, H_out) with weight_is_transposed=True (pre-transpose once at
    parameter-load time to avoid a per-call H*H HBM transpose).
    bias/gamma/beta: (H,).

    Fast path: pass compute_dtype=jnp.bfloat16 (or bf16 inputs) so the matmul
    runs on the bf16 MXU; accumulation and the GELU+LayerNorm epilogue stay
    f32 and the output keeps x.dtype.
    """
    orig_shape = x.shape
    H = orig_shape[-1]
    x2d = x.reshape(-1, H)
    M = x2d.shape[0]

    w_t = jnp.asarray(weight)
    if not weight_is_transposed:
        w_t = w_t.T                       # (H_in, H_out); hoist for static weights
    if compute_dtype is not None:
        x2d = x2d.astype(compute_dtype)
        w_t = w_t.astype(compute_dtype)
    else:
        w_t = w_t.astype(x2d.dtype)

    # Small per-channel params stay f32 for the epilogue.
    b2d = jnp.asarray(bias).reshape(1, H).astype(jnp.float32)
    g2d = jnp.asarray(gamma).reshape(1, H).astype(jnp.float32)
    be2d = jnp.asarray(beta).reshape(1, H).astype(jnp.float32)

    out_dtype = x.dtype
    in_bytes = jnp.dtype(x2d.dtype).itemsize
    out_bytes = jnp.dtype(out_dtype).itemsize

    # Sublane-packing minimum for the row (second-minor) axis.
    min_rows = max(32 // min(in_bytes, out_bytes), 8)

    # Generation-aware VMEM budget (v5e/v6e: 128 MiB, v7x: 64 MiB per core),
    # leaving headroom for Mosaic internal scratch / semaphores.
    capacity = _vmem_capacity_bytes()
    budget = int(capacity * 0.85)

    # block_rows: as large as the budget allows.  Weight is resident
    # (single-buffered), x/out tiles double-buffered, f32 temporaries per row.
    fixed_bytes = H * H * in_bytes + 3 * 8 * H * 4 + (2 << 20)
    per_row_bytes = 2 * H * in_bytes + 2 * H * out_bytes + 3 * H * 4
    avail = max(budget * 2 // 3 - fixed_bytes, per_row_bytes * min_rows)
    rows_cap = max((avail // per_row_bytes) // min_rows * min_rows, min_rows)

    if block_rows is None:
        block_rows = 512 if in_bytes >= 4 else 1024
    block_rows = _round_up(max(int(block_rows), min_rows), min_rows)
    block_rows = min(block_rows, rows_cap, _round_up(M, min_rows))

    # Megacore (v7x): make sure there are >= 2 grid steps to shard across the
    # two TensorCores when M is small (harmless on 1-TC v5e/v6e).
    if pl.cdiv(M, block_rows) < 2 and M >= 2 * min_rows:
        block_rows = _round_up(pl.cdiv(M, 2), min_rows)

    grid0 = pl.cdiv(M, block_rows)   # partial last block handled by masking.

    # Sub-tile the row block inside the kernel to overlap epilogue with MXU.
    n_sub = 1
    for cand in (4, 2):
        if block_rows % (cand * min_rows) == 0:
            n_sub = cand
            break
    sub_rows = block_rows // n_sub

    kernel = functools.partial(_transform_kernel, eps=float(eps), inv_h=1.0 / H,
                               sub_rows=sub_rows, n_sub=n_sub, act=act)

    cost = pl.CostEstimate(
        flops=2 * M * H * H,
        transcendentals=M * H,
        bytes_accessed=(M * H * in_bytes + H * H * in_bytes
                        + M * H * out_bytes + 3 * H * 4),
    )

    def build(single_buffer_consts):
        if single_buffer_consts:
            w_bufs = 1
            const_kw = dict(pipeline_mode=pl.Buffered(buffer_count=1))
        else:
            w_bufs = 2
            const_kw = {}
        vmem_est = (w_bufs * H * H * in_bytes
                    + 2 * block_rows * H * in_bytes
                    + 2 * block_rows * H * out_bytes
                    + w_bufs * 3 * 8 * H * 4
                    + 3 * sub_rows * H * 4)
        vmem_limit = int(min(max(vmem_est * 2, 32 * 1024 * 1024), budget))
        return pl.pallas_call(
            kernel,
            out_shape=jax.ShapeDtypeStruct((M, H), out_dtype),
            grid_spec=pltpu.PrefetchScalarGridSpec(
                num_scalar_prefetch=0,
                grid=(grid0,),
                in_specs=[
                    pl.BlockSpec((block_rows, H), lambda i: (i, 0)),          # x tile
                    pl.BlockSpec((H, H), lambda i: (0, 0), **const_kw),       # W^T (resident)
                    pl.BlockSpec((1, H), lambda i: (0, 0), **const_kw),       # bias
                    pl.BlockSpec((1, H), lambda i: (0, 0), **const_kw),       # gamma
                    pl.BlockSpec((1, H), lambda i: (0, 0), **const_kw),       # beta
                ],
                out_specs=pl.BlockSpec((block_rows, H), lambda i: (i, 0)),
            ),
            compiler_params=pltpu.CompilerParams(
                dimension_semantics=("parallel",),
                vmem_limit_bytes=vmem_limit,
            ),
            cost_estimate=cost,
        )

    try:
        out = build(True)(x2d, w_t, b2d, g2d, be2d)
    except Exception:
        # pipeline_mode=pl.Buffered(1) not supported by this jax build: fall
        # back to default (double-buffered) constant operands.
        out = build(False)(x2d, w_t, b2d, g2d, be2d)

    return out.reshape(orig_shape)


def _reference(x, weight, bias, gamma, beta, eps=1e-12):
    h = x @ weight.T + bias
    h = h * 0.5 * (1.0 + jax.lax.erf(h / math.sqrt(2.0)))
    mean = jnp.mean(h, axis=-1, keepdims=True)
    var = jnp.mean((h - mean) ** 2, axis=-1, keepdims=True)
    return (h - mean) * jax.lax.rsqrt(var + eps) * gamma + beta


if __name__ == "__main__":
    batch, seq, hidden = 2, 8, 32
    eps = 1e-12

    key = jax.random.PRNGKey(0)
    kx, kw, kb, kg, kbe = jax.random.split(key, 5)

    x = jax.random.normal(kx, (batch, seq, hidden), dtype=jnp.float32)
    weight = jax.random.normal(kw, (hidden, hidden), dtype=jnp.float32) * 0.05
    bias = jax.random.normal(kb, (hidden,), dtype=jnp.float32) * 0.01
    gamma = 1.0 + 0.1 * jax.random.normal(kg, (hidden,), dtype=jnp.float32)
    beta = 0.1 * jax.random.normal(kbe, (hidden,), dtype=jnp.float32)

    # f32 path (exact reference semantics).
    out = bert_prediction_head_transform(x, weight, bias, gamma, beta, eps=eps)
    out = jax.block_until_ready(out)
    ref = _reference(x, weight, bias, gamma, beta, eps=eps)
    assert out.shape == x.shape
    assert jnp.allclose(out, ref, atol=1e-5, rtol=1e-5), "f32 mismatch vs reference"

    # bf16 MXU fast path (f32 accumulation + f32 epilogue): compare against a
    # reference run on bf16-rounded inputs, which it should match closely.
    out_bf16 = bert_prediction_head_transform(
        x, weight, bias, gamma, beta, eps=eps, compute_dtype=jnp.bfloat16)
    out_bf16 = jax.block_until_ready(out_bf16)
    x_r = x.astype(jnp.bfloat16).astype(jnp.float32)
    w_r = weight.astype(jnp.bfloat16).astype(jnp.float32)
    ref_bf16 = _reference(x_r, w_r, bias, gamma, beta, eps=eps)
    assert out_bf16.shape == x.shape
    assert jnp.allclose(out_bf16, ref_bf16, atol=1e-3, rtol=1e-3), \
        "bf16 mismatch vs rounded reference"

    print("KERNEL_OK")
</pallas_src>

<mosaic_0001>
module attributes {stable_mosaic.version = 11 : i64} {
  func.func @_transform_kernel(%arg0: i32, %arg1: memref<8x32xf32, #tpu.memory_space<vmem>>, %arg2: memref<32x32xf32, #tpu.memory_space<vmem>>, %arg3: memref<1x32xf32, #tpu.memory_space<vmem>>, %arg4: memref<1x32xf32, #tpu.memory_space<vmem>>, %arg5: memref<1x32xf32, #tpu.memory_space<vmem>>, %arg6: memref<8x32xf32, #tpu.memory_space<vmem>>) attributes {dimension_semantics = [#tpu.dimension_semantics<parallel>], iteration_bounds = array<i64: 2>, scalar_prefetch = 0 : i64, scratch_operands = 0 : i64, tpu.core_type = #tpu.core_type<tc>, window_params = [{transform_indices = @transform_0, window_bounds = array<i64: 8, 32>}, {pipeline_mode = #tpu.pipeline_mode<synchronous>, transform_indices = @transform_1, window_bounds = array<i64: 32, 32>}, {pipeline_mode = #tpu.pipeline_mode<synchronous>, transform_indices = @transform_2, window_bounds = array<i64: 1, 32>}, {pipeline_mode = #tpu.pipeline_mode<synchronous>, transform_indices = @transform_3, window_bounds = array<i64: 1, 32>}, {pipeline_mode = #tpu.pipeline_mode<synchronous>, transform_indices = @transform_4, window_bounds = array<i64: 1, 32>}, {transform_indices = @transform_5, window_bounds = array<i64: 8, 32>}]} {
    %c0 = arith.constant 0 : index
    %c0_0 = arith.constant 0 : index
    %0 = vector.load %arg2[%c0, %c0_0] : memref<32x32xf32, #tpu.memory_space<vmem>>, vector<32x32xf32>
    %c0_1 = arith.constant 0 : index
    %c0_2 = arith.constant 0 : index
    %1 = vector.load %arg3[%c0_1, %c0_2] : memref<1x32xf32, #tpu.memory_space<vmem>>, vector<1x32xf32>
    %c0_3 = arith.constant 0 : index
    %c0_4 = arith.constant 0 : index
    %2 = vector.load %arg4[%c0_3, %c0_4] : memref<1x32xf32, #tpu.memory_space<vmem>>, vector<1x32xf32>
    %c0_5 = arith.constant 0 : index
    %c0_6 = arith.constant 0 : index
    %3 = vector.load %arg5[%c0_5, %c0_6] : memref<1x32xf32, #tpu.memory_space<vmem>>, vector<1x32xf32>
    %c0_i32 = arith.constant 0 : i32
    %c8_i32 = arith.constant 8 : i32
    %4 = arith.muli %c0_i32, %c8_i32 : i32
    %5 = tpu.assume_multiple %4, 8 : i32
    %6 = arith.index_cast %5 : i32 to index
    %c0_7 = arith.constant 0 : index
    %7 = vector.load %arg1[%6, %c0_7] : memref<8x32xf32, #tpu.memory_space<vmem>>, vector<8x32xf32>
    %cst = arith.constant dense<0.000000e+00> : vector<8x32xf32>
    %8 = tpu.matmul %7, %0, %cst {dimension_numbers = #tpu.dot_dimension_numbers<[1], [0], [0], [1], [0, 0, 1, 1], [], []>} : vector<8x32xf32>, vector<32x32xf32>, vector<8x32xf32> -> vector<8x32xf32>
    %9 = vector.broadcast %1 : vector<1x32xf32> to vector<8x32xf32>
    %10 = arith.addf %8, %9 : vector<8x32xf32>
    %cst_8 = arith.constant 5.000000e-01 : f32
    %11 = vector.broadcast %cst_8 : f32 to vector<8x32xf32>
    %12 = arith.mulf %10, %11 : vector<8x32xf32>
    %cst_9 = arith.constant 0.707106769 : f32
    %13 = vector.broadcast %cst_9 : f32 to vector<8x32xf32>
    %14 = arith.mulf %10, %13 : vector<8x32xf32>
    %15 = math.erf %14 : vector<8x32xf32>
    %cst_10 = arith.constant 1.000000e+00 : f32
    %16 = vector.broadcast %cst_10 : f32 to vector<8x32xf32>
    %17 = arith.addf %16, %15 : vector<8x32xf32>
    %18 = arith.mulf %12, %17 : vector<8x32xf32>
    %cst_11 = arith.constant dense<0.000000e+00> : vector<8xf32>
    %19 = vector.multi_reduction <add>, %18, %cst_11 [1] : vector<8x32xf32> to vector<8xf32>
    %20 = vector.shape_cast %19 : vector<8xf32> to vector<8x1xf32>
    %cst_12 = arith.constant 3.125000e-02 : f32
    %21 = vector.broadcast %cst_12 : f32 to vector<8x1xf32>
    %22 = arith.mulf %20, %21 : vector<8x1xf32>
    %23 = arith.mulf %18, %18 : vector<8x32xf32>
    %cst_13 = arith.constant dense<0.000000e+00> : vector<8xf32>
    %24 = vector.multi_reduction <add>, %23, %cst_13 [1] : vector<8x32xf32> to vector<8xf32>
    %25 = vector.shape_cast %24 : vector<8xf32> to vector<8x1xf32>
    %cst_14 = arith.constant 3.125000e-02 : f32
    %26 = vector.broadcast %cst_14 : f32 to vector<8x1xf32>
    %27 = arith.mulf %25, %26 : vector<8x1xf32>
    %28 = arith.mulf %22, %22 : vector<8x1xf32>
    %29 = arith.subf %27, %28 : vector<8x1xf32>
    %cst_15 = arith.constant 0.000000e+00 : f32
    %30 = vector.broadcast %cst_15 : f32 to vector<8x1xf32>
    %31 = arith.maximumf %29, %30 : vector<8x1xf32>
    %32 = vector.broadcast %22 : vector<8x1xf32> to vector<8x32xf32>
    %33 = arith.subf %18, %32 : vector<8x32xf32>
    %cst_16 = arith.constant 9.99999996E-13 : f32
    %34 = vector.broadcast %cst_16 : f32 to vector<8x1xf32>
    %35 = arith.addf %31, %34 : vector<8x1xf32>
    %36 = math.rsqrt %35 : vector<8x1xf32>
    %37 = vector.broadcast %36 : vector<8x1xf32> to vector<8x32xf32>
    %38 = arith.mulf %33, %37 : vector<8x32xf32>
    %39 = vector.broadcast %2 : vector<1x32xf32> to vector<8x32xf32>
    %40 = arith.mulf %38, %39 : vector<8x32xf32>
    %41 = vector.broadcast %3 : vector<1x32xf32> to vector<8x32xf32>
    %42 = arith.addf %40, %41 : vector<8x32xf32>
    %43 = arith.index_cast %5 : i32 to index
    %c0_17 = arith.constant 0 : index
    %44 = vector.load %arg6[%43, %c0_17] : memref<8x32xf32, #tpu.memory_space<vmem>>, vector<8x32xf32>
    tpu.vector_store %arg6[%43, %c0_17], %42 {strides = array<i32>} : memref<8x32xf32, #tpu.memory_space<vmem>>, vector<8x32xf32>,
    %c1_i32 = arith.constant 1 : i32
    return
  }
  func.func @transform_0(%arg0: i32) -> (i32, i32) {
    %c0_i32 = arith.constant 0 : i32
    %c0_i32_0 = arith.constant 0 : i32
    return %arg0, %c0_i32 : i32, i32
  }
  func.func @transform_1(%arg0: i32) -> (i32, i32) {
    %c0_i32 = arith.constant 0 : i32
    %c0_i32_0 = arith.constant 0 : i32
    %c0_i32_1 = arith.constant 0 : i32
    return %c0_i32, %c0_i32_0 : i32, i32
  }
  func.func @transform_2(%arg0: i32) -> (i32, i32) {
    %c0_i32 = arith.constant 0 : i32
    %c0_i32_0 = arith.constant 0 : i32
    %c0_i32_1 = arith.constant 0 : i32
    return %c0_i32, %c0_i32_0 : i32, i32
  }
  func.func @transform_3(%arg0: i32) -> (i32, i32) {
    %c0_i32 = arith.constant 0 : i32
    %c0_i32_0 = arith.constant 0 : i32
    %c0_i32_1 = arith.constant 0 : i32
    return %c0_i32, %c0_i32_0 : i32, i32
  }
  func.func @transform_4(%arg0: i32) -> (i32, i32) {
    %c0_i32 = arith.constant 0 : i32
    %c0_i32_0 = arith.constant 0 : i32
    %c0_i32_1 = arith.constant 0 : i32
    return %c0_i32, %c0_i32_0 : i32, i32
  }
  func.func @transform_5(%arg0: i32) -> (i32, i32) {
    %c0_i32 = arith.constant 0 : i32
    %c0_i32_0 = arith.constant 0 : i32
    return %arg0, %c0_i32 : i32, i32
  }
}

module attributes {stable_mosaic.version = 11 : i64} {
  func.func @_transform_kernel(%arg0: i32, %arg1: memref<8x32xf32, #tpu.memory_space<vmem>>, %arg2: memref<32x32xf32, #tpu.memory_space<vmem>>, %arg3: memref<1x32xf32, #tpu.memory_space<vmem>>, %arg4: memref<1x32xf32, #tpu.memory_space<vmem>>, %arg5: memref<1x32xf32, #tpu.memory_space<vmem>>, %arg6: memref<8x32xf32, #tpu.memory_space<vmem>>) attributes {dimension_semantics = [#tpu.dimension_semantics<parallel>], iteration_bounds = array<i64: 2>, scalar_prefetch = 0 : i64, scratch_operands = 0 : i64, tpu.core_type = #tpu.core_type<tc>, window_params = [{transform_indices = @transform_0, window_bounds = array<i64: 8, 32>}, {pipeline_mode = #tpu.pipeline_mode<synchronous>, transform_indices = @transform_1, window_bounds = array<i64: 32, 32>}, {pipeline_mode = #tpu.pipeline_mode<synchronous>, transform_indices = @transform_2, window_bounds = array<i64: 1, 32>}, {pipeline_mode = #tpu.pipeline_mode<synchronous>, transform_indices = @transform_3, window_bounds = array<i64: 1, 32>}, {pipeline_mode = #tpu.pipeline_mode<synchronous>, transform_indices = @transform_4, window_bounds = array<i64: 1, 32>}, {transform_indices = @transform_5, window_bounds = array<i64: 8, 32>}]} {
    %c0 = arith.constant 0 : index
    %c0_0 = arith.constant 0 : index
    %0 = vector.load %arg2[%c0, %c0_0] : memref<32x32xf32, #tpu.memory_space<vmem>>, vector<32x32xf32>
    %c0_1 = arith.constant 0 : index
    %c0_2 = arith.constant 0 : index
    %1 = vector.load %arg3[%c0_1, %c0_2] : memref<1x32xf32, #tpu.memory_space<vmem>>, vector<1x32xf32>
    %c0_3 = arith.constant 0 : index
    %c0_4 = arith.constant 0 : index
    %2 = vector.load %arg4[%c0_3, %c0_4] : memref<1x32xf32, #tpu.memory_space<vmem>>, vector<1x32xf32>
    %c0_5 = arith.constant 0 : index
    %c0_6 = arith.constant 0 : index
    %3 = vector.load %arg5[%c0_5, %c0_6] : memref<1x32xf32, #tpu.memory_space<vmem>>, vector<1x32xf32>
    %c0_i32 = arith.constant 0 : i32
    %c8_i32 = arith.constant 8 : i32
    %4 = arith.muli %c0_i32, %c8_i32 : i32
    %5 = tpu.assume_multiple %4, 8 : i32
    %6 = arith.index_cast %5 : i32 to index
    %c0_7 = arith.constant 0 : index
    %7 = vector.load %arg1[%6, %c0_7] : memref<8x32xf32, #tpu.memory_space<vmem>>, vector<8x32xf32>
    %cst = arith.constant dense<0.000000e+00> : vector<8x32xf32>
    %8 = tpu.matmul %7, %0, %cst {dimension_numbers = #tpu.dot_dimension_numbers<[1], [0], [0], [1], [0, 0, 1, 1], [], []>} : vector<8x32xf32>, vector<32x32xf32>, vector<8x32xf32> -> vector<8x32xf32>
    %9 = vector.broadcast %1 : vector<1x32xf32> to vector<8x32xf32>
    %10 = arith.addf %8, %9 : vector<8x32xf32>
    %cst_8 = arith.constant 5.000000e-01 : f32
    %11 = vector.broadcast %cst_8 : f32 to vector<8x32xf32>
    %12 = arith.mulf %10, %11 : vector<8x32xf32>
    %cst_9 = arith.constant 0.707106769 : f32
    %13 = vector.broadcast %cst_9 : f32 to vector<8x32xf32>
    %14 = arith.mulf %10, %13 : vector<8x32xf32>
    %15 = math.erf %14 : vector<8x32xf32>
    %cst_10 = arith.constant 1.000000e+00 : f32
    %16 = vector.broadcast %cst_10 : f32 to vector<8x32xf32>
    %17 = arith.addf %16, %15 : vector<8x32xf32>
    %18 = arith.mulf %12, %17 : vector<8x32xf32>
    %cst_11 = arith.constant dense<0.000000e+00> : vector<8xf32>
    %19 = vector.multi_reduction <add>, %18, %cst_11 [1] : vector<8x32xf32> to vector<8xf32>
    %20 = vector.shape_cast %19 : vector<8xf32> to vector<8x1xf32>
    %cst_12 = arith.constant 3.125000e-02 : f32
    %21 = vector.broadcast %cst_12 : f32 to vector<8x1xf32>
    %22 = arith.mulf %20, %21 : vector<8x1xf32>
    %23 = arith.mulf %18, %18 : vector<8x32xf32>
    %cst_13 = arith.constant dense<0.000000e+00> : vector<8xf32>
    %24 = vector.multi_reduction <add>, %23, %cst_13 [1] : vector<8x32xf32> to vector<8xf32>
    %25 = vector.shape_cast %24 : vector<8xf32> to vector<8x1xf32>
    %cst_14 = arith.constant 3.125000e-02 : f32
    %26 = vector.broadcast %cst_14 : f32 to vector<8x1xf32>
    %27 = arith.mulf %25, %26 : vector<8x1xf32>
    %28 = arith.mulf %22, %22 : vector<8x1xf32>
    %29 = arith.subf %27, %28 : vector<8x1xf32>
    %cst_15 = arith.constant 0.000000e+00 : f32
    %30 = vector.broadcast %cst_15 : f32 to vector<8x1xf32>
    %31 = arith.maximumf %29, %30 : vector<8x1xf32>
    %32 = vector.broadcast %22 : vector<8x1xf32> to vector<8x32xf32>
    %33 = arith.subf %18, %32 : vector<8x32xf32>
    %cst_16 = arith.constant 9.99999996E-13 : f32
    %34 = vector.broadcast %cst_16 : f32 to vector<8x1xf32>
    %35 = arith.addf %31, %34 : vector<8x1xf32>
    %36 = math.rsqrt %35 : vector<8x1xf32>
    %37 = vector.broadcast %36 : vector<8x1xf32> to vector<8x32xf32>
    %38 = arith.mulf %33, %37 : vector<8x32xf32>
    %39 = vector.broadcast %2 : vector<1x32xf32> to vector<8x32xf32>
    %40 = arith.mulf %38, %39 : vector<8x32xf32>
    %41 = vector.broadcast %3 : vector<1x32xf32> to vector<8x32xf32>
    %42 = arith.addf %40, %41 : vector<8x32xf32>
    %43 = arith.index_cast %5 : i32 to index
    %c0_17 = arith.constant 0 : index
    %44 = vector.load %arg6[%43, %c0_17] : memref<8x32xf32, #tpu.memory_space<vmem>>, vector<8x32xf32>
    tpu.vector_store %arg6[%43, %c0_17], %42 {strides = array<i32>} : memref<8x32xf32, #tpu.memory_space<vmem>>, vector<8x32xf32>,
    %c1_i32 = arith.constant 1 : i32
    return
  }
  func.func @transform_0(%arg0: i32) -> (i32, i32) {
    %c0_i32 = arith.constant 0 : i32
    %c0_i32_0 = arith.constant 0 : i32
    return %arg0, %c0_i32 : i32, i32
  }
  func.func @transform_1(%arg0: i32) -> (i32, i32) {
    %c0_i32 = arith.constant 0 : i32
    %c0_i32_0 = arith.constant 0 : i32
    %c0_i32_1 = arith.constant 0 : i32
    return %c0_i32, %c0_i32_0 : i32, i32
  }
  func.func @transform_2(%arg0: i32) -> (i32, i32) {
    %c0_i32 = arith.constant 0 : i32
    %c0_i32_0 = arith.constant 0 : i32
    %c0_i32_1 = arith.constant 0 : i32
    return %c0_i32, %c0_i32_0 : i32, i32
  }
  func.func @transform_3(%arg0: i32) -> (i32, i32) {
    %c0_i32 = arith.constant 0 : i32
    %c0_i32_0 = arith.constant 0 : i32
    %c0_i32_1 = arith.constant 0 : i32
    return %c0_i32, %c0_i32_0 : i32, i32
  }
  func.func @transform_4(%arg0: i32) -> (i32, i32) {
    %c0_i32 = arith.constant 0 : i32
    %c0_i32_0 = arith.constant 0 : i32
    %c0_i32_1 = arith.constant 0 : i32
    return %c0_i32, %c0_i32_0 : i32, i32
  }
  func.func @transform_5(%arg0: i32) -> (i32, i32) {
    %c0_i32 = arith.constant 0 : i32
    %c0_i32_0 = arith.constant 0 : i32
    return %arg0, %c0_i32 : i32, i32
  }
}

</mosaic_0001>

<llo_original>
// kernel: tpu_custom_call.1
$region0: #{tpu_custom_call.1}
  #allocation0 [shape = 'u32[]', space=smem, size = 0x4, offset = 0x4, fixed_abs, tag = 'smem constant byte address 0x4 - core index']
  #allocation1 [shape = 'u32[144,128]{1,0:T(1,128)}', space=vmem, size = 0x12000, scoped, tag = 'internal scratch']
  %s0 = inlined_call_operand.hbm [shape: f32[16,32], index: 0, kind: input, shape index: {}]
  %s1 = inlined_call_operand.hbm [shape: f32[32,32], index: 1, kind: input, shape index: {}]
  %s2 = inlined_call_operand.vmem [shape: f32[1,32], index: 2, kind: input, shape index: {}]
  %s3 = inlined_call_operand.vmem [shape: f32[1,32], index: 3, kind: input, shape index: {}]
  %s4 = inlined_call_operand.vmem [shape: f32[1,32], index: 4, kind: input, shape index: {}]
  %s5 = inlined_call_operand.hbm [shape: f32[16,32], index: 5, kind: output, shape index: {}]
  %s6 = sld [smem:[#allocation0]]
  $region61: #{tpu_custom_call.1} parent=0
    _
  %s8 = ssub.s32 1, %s6
  %s9 = scalar_select 0, %s8, %s6
  $region1: #{tpu_custom_call.1} parent=0
    #allocation2 [shape = 'u8[8192]{0}', space=vmem, size = 0x2000, scoped, tag = 'input window, operand 0']
    #allocation3 [shape = 's32[2]{0}', space=sflag, size = 0x8, scoped, tag = 'scoped memory for tpu_custom_call.1']
    #allocation4 [shape = 's32[2]{0}', space=sflag, size = 0x8, scoped, tag = 'scoped memory for tpu_custom_call.1']
    #allocation5 [shape = 'u8[16384]{0}', space=vmem, size = 0x4000, scoped, tag = 'input window, operand 1, single buffered']
    #allocation6 [shape = 's32[1]{0}', space=sflag, size = 0x4, scoped, tag = 'scoped memory for tpu_custom_call.1']
    #allocation7 [shape = 'u8[8192]{0}', space=vmem, size = 0x2000, scoped, tag = 'output window, operand 0']
    %10 = vsyncpa [#allocation3], 0
    %s11 = scalar_lea.sflag [#allocation3], 1
    %12 = vsyncpa %s11, 0
    %13 = vsyncpa [#allocation6], 0
    %14 = vsyncpa [#allocation4], 0
    %s15 = scalar_lea.sflag [#allocation4], 1
    %16 = vsyncpa %s15, 0
    loop: start=0, step=1, limit=4
    $region2: #{tpu_custom_call.1} parent=1 // loop_pre_header
      _
    $region3: #{tpu_custom_call.1} parent=1 // loop_header
      %s18 = sphi 0, %s22
      %p19 = scmp.ge.s32.totalorder %s18, 4
      %s28 = sphi 0, %s30
      %s31 = sphi 0, %s28
      %s32 = sphi 0, %s31
      %s48 = sphi 0, %s32
      %s52 = sphi 0, %s52
      %s54 = sphi 0, %s52
      %s55 = sphi 0, %s54
      %s69 = sphi 0, %s55
      %s73 = sphi 0, %s73
      %s75 = sphi 0, %s73
      %s76 = sphi 0, %s75
      %s90 = sphi 0, %s76
      %s94 = sphi 0, %s94
      %s96 = sphi 0, %s94
      %s97 = sphi 0, %s96
      %s111 = sphi 0, %s97
      %s115 = sphi 0, %s115
      %s117 = sphi 0, %s115
      %s118 = sphi 0, %s117
      %s132 = sphi 0, %s118
      %s138 = sphi 0, %s140
      %s141 = sphi 0, %s138
      %s142 = sphi 0, %s141
      %s158 = sphi 0, %s142
    $region4: #{tpu_custom_call.1} parent=1 // loop_header_branch
      %21 = sbr.rel (%p19) target = $region8
    $region5: #{tpu_custom_call.1} parent=1 // loop_body
      %s23 = ssub.s32 %s18, 1
      %s24 = ssub.s32 %s18, 2
      %s25 = sadd.s32 %s18, 1
      %s26 = ssub.s32 %s18, %s25
      %p27 = scmp.eq.s32.totalorder %s26, 0
      %s29 = sadd.s32 %s28, 1
      %s30 = scalar_select %p27, %s28, %s29
      %p33 = pneg %p27
      %p34 = scmp.eq.s32.totalorder %s18, 1
      %p35 = por %p33, %p34
      %p36 = scmp.ne.s32.totalorder %s28, %s31
      %p37 = scmp.eq.s32.totalorder %s18, 0
      %p38 = por %p36, %p37
      %p39 = scmp.ne.s32.totalorder %s28, %s31
      %p40 = scmp.eq.s32.totalorder %s23, 1
      %p41 = por %p39, %p40
      %p42 = scmp.ne.s32.totalorder %s31, %s32
      %p43 = scmp.eq.s32.totalorder %s23, 0
      %p44 = por %p42, %p43
      %p45 = scmp.ne.s32.totalorder %s31, %s32
      %p46 = scmp.eq.s32.totalorder %s24, 1
      %p47 = por %p45, %p46
      %p49 = scmp.ne.s32.totalorder %s32, %s48
      %p50 = scmp.eq.s32.totalorder %s24, 0
      %p51 = por %p49, %p50
      %s53 = sadd.s32 %s52, 1
      %p56 = scmp.eq.s32.totalorder %s18, 1
      %p57 = scmp.ne.s32.totalorder %s52, %s54
      %p58 = scmp.eq.s32.totalorder %s18, 0
      %p59 = por %p57, %p58
      %p60 = scmp.ne.s32.totalorder %s52, %s54
      %p61 = scmp.eq.s32.totalorder %s23, 1
      %p62 = por %p60, %p61
      %p63 = scmp.ne.s32.totalorder %s54, %s55
      %p64 = scmp.eq.s32.totalorder %s23, 0
      %p65 = por %p63, %p64
      %p66 = scmp.ne.s32.totalorder %s54, %s55
      %p67 = scmp.eq.s32.totalorder %s24, 1
      %p68 = por %p66, %p67
      %p70 = scmp.ne.s32.totalorder %s55, %s69
      %p71 = scmp.eq.s32.totalorder %s24, 0
      %p72 = por %p70, %p71
      %s74 = sadd.s32 %s73, 1
      %p77 = scmp.eq.s32.totalorder %s18, 1
      %p78 = scmp.ne.s32.totalorder %s73, %s75
      %p79 = scmp.eq.s32.totalorder %s18, 0
      %p80 = por %p78, %p79
      %p81 = scmp.ne.s32.totalorder %s73, %s75
      %p82 = scmp.eq.s32.totalorder %s23, 1
      %p83 = por %p81, %p82
      %p84 = scmp.ne.s32.totalorder %s75, %s76
      %p85 = scmp.eq.s32.totalorder %s23, 0
      %p86 = por %p84, %p85
      %p87 = scmp.ne.s32.totalorder %s75, %s76
      %p88 = scmp.eq.s32.totalorder %s24, 1
      %p89 = por %p87, %p88
      %p91 = scmp.ne.s32.totalorder %s76, %s90
      %p92 = scmp.eq.s32.totalorder %s24, 0
      %p93 = por %p91, %p92
      %s95 = sadd.s32 %s94, 1
      %p98 = scmp.eq.s32.totalorder %s18, 1
      %p99 = scmp.ne.s32.totalorder %s94, %s96
      %p100 = scmp.eq.s32.totalorder %s18, 0
      %p101 = por %p99, %p100
      %p102 = scmp.ne.s32.totalorder %s94, %s96
      %p103 = scmp.eq.s32.totalorder %s23, 1
      %p104 = por %p102, %p103
      %p105 = scmp.ne.s32.totalorder %s96, %s97
      %p106 = scmp.eq.s32.totalorder %s23, 0
      %p107 = por %p105, %p106
      %p108 = scmp.ne.s32.totalorder %s96, %s97
      %p109 = scmp.eq.s32.totalorder %s24, 1
      %p110 = por %p108, %p109
      %p112 = scmp.ne.s32.totalorder %s97, %s111
      %p113 = scmp.eq.s32.totalorder %s24, 0
      %p114 = por %p112, %p113
      %s116 = sadd.s32 %s115, 1
      %p119 = scmp.eq.s32.totalorder %s18, 1
      %p120 = scmp.ne.s32.totalorder %s115, %s117
      %p121 = scmp.eq.s32.totalorder %s18, 0
      %p122 = por %p120, %p121
      %p123 = scmp.ne.s32.totalorder %s115, %s117
      %p124 = scmp.eq.s32.totalorder %s23, 1
      %p125 = por %p123, %p124
      %p126 = scmp.ne.s32.totalorder %s117, %s118
      %p127 = scmp.eq.s32.totalorder %s23, 0
      %p128 = por %p126, %p127
      %p129 = scmp.ne.s32.totalorder %s117, %s118
      %p130 = scmp.eq.s32.totalorder %s24, 1
      %p131 = por %p129, %p130
      %p133 = scmp.ne.s32.totalorder %s118, %s132
      %p134 = scmp.eq.s32.totalorder %s24, 0
      %p135 = por %p133, %p134
      %s136 = ssub.s32 %s18, %s25
      %p137 = scmp.eq.s32.totalorder %s136, 0
      %s139 = sadd.s32 %s138, 1
      %s140 = scalar_select %p137, %s138, %s139
      %p143 = pneg %p137
      %p144 = scmp.eq.s32.totalorder %s18, 1
      %p145 = por %p143, %p144
      %p146 = scmp.ne.s32.totalorder %s138, %s141
      %p147 = scmp.eq.s32.totalorder %s18, 0
      %p148 = por %p146, %p147
      %p149 = scmp.ne.s32.totalorder %s138, %s141
      %p150 = scmp.eq.s32.totalorder %s23, 1
      %p151 = por %p149, %p150
      %p152 = scmp.ne.s32.totalorder %s141, %s142
      %p153 = scmp.eq.s32.totalorder %s23, 0
      %p154 = por %p152, %p153
      %p155 = scmp.ne.s32.totalorder %s141, %s142
      %p156 = scmp.eq.s32.totalorder %s24, 1
      %p157 = por %p155, %p156
      %p159 = scmp.ne.s32.totalorder %s142, %s158
      %p160 = scmp.eq.s32.totalorder %s24, 0
      %p161 = por %p159, %p160
      %p162 = scmp.le.s32.totalorder 1, %s18
      %p163 = scmp.lt.s32.totalorder %s18, 3
      %p164 = pnand %p162, %p163
      %p165 = pneg %p164
      // Predicated region
      $region9: #{tpu_custom_call.1} parent=5 // pred_check
        _
      $region10: #{tpu_custom_call.1} parent=5 // pred_check_branch
        %167 = sbr.rel (%p164) target = $region12
      $region11: #{tpu_custom_call.1} parent=5 // pred_region
        %s168 = ssub.s32 %s18, 1
        // Predicated region
        $region13: #{tpu_custom_call.1} parent=11 // pred_check
          %p169 = pneg %p65
        $region14: #{tpu_custom_call.1} parent=11 // pred_check_branch
          %171 = sbr.rel (%p169) target = $region16
        $region15: #{tpu_custom_call.1} parent=11 // pred_region
          %s173 = ssub.s32 512, 512
          %174 = vsyncadd [#allocation6], %s173
          %s175 = sshll.u32 [#allocation5], 4
          %s176 = int_to_ptr.vmem [resolvable:$true] %s175
          %181 = dma.hbm_to_vmem [thread:$0]  %s1, 512, %s176, [#allocation6], 128, 128, 8
        $region16: #{tpu_custom_call.1} parent=11 // pred_fallthru
          _
        // Predicated region
        $region17: #{tpu_custom_call.1} parent=11 // pred_check
          %p182 = pneg %p86
        $region18: #{tpu_custom_call.1} parent=11 // pred_check_branch
          %184 = sbr.rel (%p182) target = $region20
        $region19: #{tpu_custom_call.1} parent=11 // pred_region
          _
        $region20: #{tpu_custom_call.1} parent=11 // pred_fallthru
          _
        // Predicated region
        $region21: #{tpu_custom_call.1} parent=11 // pred_check
          %p185 = pneg %p107
        $region22: #{tpu_custom_call.1} parent=11 // pred_check_branch
          %187 = sbr.rel (%p185) target = $region24
        $region23: #{tpu_custom_call.1} parent=11 // pred_region
          _
        $region24: #{tpu_custom_call.1} parent=11 // pred_fallthru
          _
        // Predicated region
        $region25: #{tpu_custom_call.1} parent=11 // pred_check
          %p188 = pneg %p128
        $region26: #{tpu_custom_call.1} parent=11 // pred_check_branch
          %190 = sbr.rel (%p188) target = $region28
        $region27: #{tpu_custom_call.1} parent=11 // pred_region
          _
        $region28: #{tpu_custom_call.1} parent=11 // pred_fallthru
          _
      $region12: #{tpu_custom_call.1} parent=5 // pred_fallthru
        _
      %p191 = scmp.lt.s32.totalorder %s18, 2
      // Predicated region
      $region29: #{tpu_custom_call.1} parent=5 // pred_check
        %p192 = pneg %p191
      $region30: #{tpu_custom_call.1} parent=5 // pred_check_branch
        %194 = sbr.rel (%p192) target = $region32
      $region31: #{tpu_custom_call.1} parent=5 // pred_region
        // Predicated region
        $region33: #{tpu_custom_call.1} parent=31 // pred_check
          %p195 = pneg %p38
        $region34: #{tpu_custom_call.1} parent=31 // pred_check_branch
          %197 = sbr.rel (%p195) target = $region36
        $region35: #{tpu_custom_call.1} parent=31 // pred_region
          %s198 = sand.u32 %s28, 1
          %s199 = scalar_lea.sflag [#allocation3], %s198
          %s200 = sand.u32 %s28, 1
          %s201 = smul.addr %s200, 8
          %s202 = scalar_lea.vmem [#allocation2], %s201
          %s204 = ssub.s32 128, 128
          %205 = vsyncadd %s199, %s204
          %s206 = smul.addr %s18, 128
          %s207 = scalar_lea.hbm %s0, %s206
          %s209 = sshll.u32 %s202, 4
          %s210 = int_to_ptr.vmem [resolvable:$true] %s209
          %212 = dma.hbm_to_vmem [thread:$0]  %s207, 128, %s210, %s199
        $region36: #{tpu_custom_call.1} parent=31 // pred_fallthru
          _
      $region32: #{tpu_custom_call.1} parent=5 // pred_fallthru
        _
      %p213 = scmp.le.s32.totalorder 1, %s18
      %p214 = scmp.lt.s32.totalorder %s18, 3
      %p215 = pnand %p213, %p214
      %p216 = pneg %p215
      // Predicated region
      $region37: #{tpu_custom_call.1} parent=5 // pred_check
        _
      $region38: #{tpu_custom_call.1} parent=5 // pred_check_branch
        %218 = sbr.rel (%p215) target = $region40
      $region39: #{tpu_custom_call.1} parent=5 // pred_region
        %s219 = ssub.s32 %s18, 1
        %s220 = sand.u32 %s31, 1
        %s221 = scalar_lea.sflag [#allocation3], %s220
        %s222 = sand.u32 %s31, 1
        %s223 = smul.addr %s222, 8
        %s224 = scalar_lea.vmem [#allocation2], %s223
        // Predicated region
        $region41: #{tpu_custom_call.1} parent=39 // pred_check
          %p225 = pneg %p44
        $region42: #{tpu_custom_call.1} parent=39 // pred_check_branch
          %227 = sbr.rel (%p225) target = $region44
        $region43: #{tpu_custom_call.1} parent=39 // pred_region
          %228 = dma.done %s221, 128
        $region44: #{tpu_custom_call.1} parent=39 // pred_fallthru
          _
        // Predicated region
        $region45: #{tpu_custom_call.1} parent=39 // pred_check
          %p229 = pneg %p65
        $region46: #{tpu_custom_call.1} parent=39 // pred_check_branch
          %231 = sbr.rel (%p229) target = $region48
        $region47: #{tpu_custom_call.1} parent=39 // pred_region
          %232 = dma.done [#allocation6], 512
        $region48: #{tpu_custom_call.1} parent=39 // pred_fallthru
          _
        %s233 = sand.u32 %s31, 1
        %s234 = scalar_lea.sflag [#allocation3], %s233
        %s235 = sand.u32 %s31, 1
        %s236 = smul.addr %s235, 8
        %s237 = scalar_lea.vmem [#allocation2], %s236
        %p238 = pneg %p44
        %p239 = pneg %p41
        %p240 = pneg %p65
        %p241 = pneg %p62
        %p242 = pneg %p86
        %p243 = pneg %p83
        %p244 = pneg %p107
        %p245 = pneg %p104
        %p246 = pneg %p128
        %p247 = pneg %p125
        %p248 = pneg %p154
        %p249 = pneg %p151
        %s250 = sand.u32 %s141, 1
        %s251 = scalar_lea.sflag [#allocation4], %s250
        %s252 = sand.u32 %s141, 1
        %s253 = smul.addr %s252, 8
        %s254 = scalar_lea.vmem [#allocation7], %s253
        %v255 = vld [vmem:[#allocation5] sm:$0xff]
        %v256 = vld [vmem:[#allocation5 + $0x8] sm:$0xff]
        %v257 = vld [vmem:[#allocation5 + $0x10] sm:$0xff]
        %v258 = vld [vmem:[#allocation5 + $0x18] sm:$0xff]
        %v259 = vld [vmem:[%s2] sm:$0x1]
        %v260 = vld [vmem:[%s3] sm:$0x1]
        %v261 = vld [vmem:[%s4] sm:$0x1]
        %v262 = vld [vmem:[%s224] sm:$0xff]
        %v264 = vlaneseq
        %v265 = vshrl.u32 %v264, 7
        %v266 = vsub.s32 0, %v265
        %v267 = vrot.slane %v259, %v266
        %vm269 = vcmask 261120
        %v271 = vsel %vm269, %v262, 0
        %273 = vmatprep.subr.mxu0 0.0
        %274 = vmatpush1.msra.mxu0 %v255
        %275 = vmatprep.subr.mxu0 0.0
        %276 = vmatpush1.msra.mxu0 %v256
        %277 = vmatprep.subr.mxu0 0.0
        %278 = vmatpush1.msra.mxu0 %v257
        %279 = vmatprep.subr.mxu0 0.0
        %280 = vmatpush1.msra.mxu0 %v258
        %281 = vmatprep.subr.mxu0 0.0
        %282 = vmatpush1.msra.mxu0 0.0
        %283 = vmatprep.subr.mxu0 0.0
        %284 = vmatpush1.msra.mxu0 0.0
        %285 = vmatprep.subr.mxu0 0.0
        %286 = vmatpush1.msra.mxu0 0.0
        %287 = vmatprep.subr.mxu0 0.0
        %288 = vmatpush1.msra.mxu0 0.0
        %289 = vmatprep.subr.mxu0 0.0
        %290 = vmatpush1.msra.mxu0 0.0
        %291 = vmatprep.subr.mxu0 0.0
        %292 = vmatpush1.msra.mxu0 0.0
        %293 = vmatprep.subr.mxu0 0.0
        %294 = vmatpush1.msra.mxu0 0.0
        %295 = vmatprep.subr.mxu0 0.0
        %296 = vmatpush1.msra.mxu0 0.0
        %297 = vmatprep.subr.mxu0 0.0
        %298 = vmatpush1.msra.mxu0 0.0
        %299 = vmatprep.subr.mxu0 0.0
        %300 = vmatpush1.msra.mxu0 0.0
        %301 = vmatprep.subr.mxu0 0.0
        %302 = vmatpush1.msra.mxu0 0.0
        %303 = vmatprep.subr.mxu0 0.0
        %304 = vmatpush1.msra.mxu0 0.0
        %305 = vmatprep.subr.mxu0 0.0
        %306 = vmatpush1.msra.mxu0 0.0
        %307 = vmatprep.subr.mxu0 0.0
        %308 = vmatpush1.msra.mxu0 0.0
        %309 = vmatprep.subr.mxu0 0.0
        %310 = vmatpush1.msra.mxu0 0.0
        %311 = vmatprep.subr.mxu0 0.0
        %312 = vmatpush1.msra.mxu0 0.0
        %313 = vmatprep.subr.mxu0 0.0
        %314 = vmatpush1.msra.mxu0 0.0
        %315 = vmatprep.subr.mxu0 0.0
        %316 = vmatpush1.msra.mxu0 0.0
        %317 = vmatprep.subr.mxu0 0.0
        %318 = vmatpush1.msra.mxu0 0.0
        %319 = vmatprep.subr.mxu0 0.0
        %320 = vmatpush1.msra.mxu0 0.0
        %321 = vmatprep.subr.mxu0 0.0
        %322 = vmatpush1.msra.mxu0 0.0
        %323 = vmatprep.subr.mxu0 0.0
        %324 = vmatpush1.msra.mxu0 0.0
        %325 = vmatprep.subr.mxu0 0.0
        %326 = vmatpush1.msra.mxu0 0.0
        %327 = vmatprep.subr.mxu0 0.0
        %328 = vmatpush1.msra.mxu0 0.0
        %329 = vmatprep.subr.mxu0 0.0
        %330 = vmatpush1.msra.mxu0 0.0
        %331 = vmatprep.subr.mxu0 0.0
        %332 = vmatpush1.msra.mxu0 0.0
        %333 = vmatprep.subr.mxu0 0.0
        %334 = vmatpush1.msra.mxu0 0.0
        %335 = vmatprep.subr.mxu0 0.0
        %336 = vmatpush1.msra.mxu0 0.0
        %337 = vmatprep.mubr.f32.mxu0 0.0
        %338 = vmatmul.mubr.f32.gmra.mrb[0].mxu0 %v271
        %v339 = vpop.f32.mrb[0].mxu0
        %v340 = vadd.f32 %v267, %v339
        %v341 = vpop.f32.mrb[0].mxu0
        %342 = vdwg.mxu0
        %v343 = vmul.f32 %v340, 0.5
        %v344 = vmul.f32 %v340, 0.70710677
        %v345 = verf.f32.pop %v344
        %v346 = vadd.f32 %v345, 1.0
        %v347 = vmul.f32 %v343, %v346
        %v348 = vsel %vm269, %v347, 0.0
        %349 = vadd.xlane.f32.xlu0 %v348
        %v350 = vpop.xlane.xlu0 %349
        %v351 = vmul.f32 %v350, 0.03125
        %v352 = vmul.f32 %v347, %v347
        %v353 = vsel %vm269, %v352, 0.0
        %354 = vadd.xlane.f32.xlu0 %v353
        %v355 = vpop.xlane.xlu0 %354
        %v356 = vmul.f32 %v355, 0.03125
        %v357 = vmul.f32 %v351, %v351
        %v358 = vsub.f32 %v356, %v357
        %v359 = vmax.f32 %v358, 0.0
        %v360 = vsub.f32 %v347, %v351
        %v361 = vadd.f32 %v359, 1e-12
        %v362 = vrsqrt.pop %v361
        %v363 = vmul.f32 %v360, %v362
        %v365 = vlaneseq
        %v366 = vshrl.u32 %v365, 7
        %v367 = vsub.s32 0, %v366
        %v368 = vrot.slane %v260, %v367
        %v370 = vmul.f32 %v363, %v368
        %v372 = vlaneseq
        %v373 = vshrl.u32 %v372, 7
        %v374 = vsub.s32 0, %v373
        %v375 = vrot.slane %v261, %v374
        %v377 = vadd.f32 %v370, %v375
        %378 = vst.msk [vmem:[%s254] sm:$0xff] %vm269, %v377
        %s379 = sand.u32 %s141, 1
        %s380 = scalar_lea.sflag [#allocation4], %s379
        %s381 = sand.u32 %s141, 1
        %s382 = smul.addr %s381, 8
        %s383 = scalar_lea.vmem [#allocation7], %s382
        // Predicated region
        $region49: #{tpu_custom_call.1} parent=39 // pred_check
          %p384 = pneg %p151
        $region50: #{tpu_custom_call.1} parent=39 // pred_check_branch
          %386 = sbr.rel (%p384) target = $region52
        $region51: #{tpu_custom_call.1} parent=39 // pred_region
          %s388 = ssub.s32 128, 128
          %389 = vsyncadd %s380, %s388
          %s390 = smul.addr %s23, 128
          %s391 = scalar_lea.hbm %s5, %s390
          %s393 = sshll.u32 %s383, 4
          %s394 = int_to_ptr.vmem [resolvable:$true] %s393
          %396 = dma.vmem_to_hbm [thread:$0]  %s394, 128, %s391, %s380
        $region52: #{tpu_custom_call.1} parent=39 // pred_fallthru
          _
      $region40: #{tpu_custom_call.1} parent=5 // pred_fallthru
        _
      %p397 = scmp.le.s32.totalorder 2, %s18
      // Predicated region
      $region53: #{tpu_custom_call.1} parent=5 // pred_check
        %p398 = pneg %p397
      $region54: #{tpu_custom_call.1} parent=5 // pred_check_branch
        %400 = sbr.rel (%p398) target = $region56
      $region55: #{tpu_custom_call.1} parent=5 // pred_region
        %s401 = ssub.s32 %s18, 2
        // Predicated region
        $region57: #{tpu_custom_call.1} parent=55 // pred_check
          %p402 = pneg %p157
        $region58: #{tpu_custom_call.1} parent=55 // pred_check_branch
          %404 = sbr.rel (%p402) target = $region60
        $region59: #{tpu_custom_call.1} parent=55 // pred_region
          %s405 = sand.u32 %s142, 1
          %s406 = scalar_lea.sflag [#allocation4], %s405
          %s407 = sand.u32 %s142, 1
          %s408 = smul.addr %s407, 8
          %s409 = scalar_lea.vmem [#allocation7], %s408
          %410 = dma.done %s406, 128
        $region60: #{tpu_custom_call.1} parent=55 // pred_fallthru
          _
      $region56: #{tpu_custom_call.1} parent=5 // pred_fallthru
        _
    $region6: #{tpu_custom_call.1} parent=1 // loop_footer
      %s22 = sadd.s32 1, %s18
    $region7: #{tpu_custom_call.1} parent=1 // loop_footer_branch
      %17 = sbr.rel target = $region3
    $region8: #{tpu_custom_call.1} parent=1 // loop_exit
      _
    %411 = vsyncpa [#allocation3], 1
    %s412 = scalar_lea.sflag [#allocation3], 1
    %413 = vsyncpa %s412, 1
    %414 = vsyncpa [#allocation6], 1
    %415 = vsyncpa [#allocation4], 1
    %s416 = scalar_lea.sflag [#allocation4], 1
    %417 = vsyncpa %s416, 1

// kernel: tpu_custom_call.1
$region0: #{tpu_custom_call.1}
  #allocation0 [shape = 'u32[]', space=smem, size = 0x4, offset = 0x4, fixed_abs, tag = 'smem constant byte address 0x4 - core index']
  #allocation1 [shape = 'u32[144,128]{1,0:T(1,128)}', space=vmem, size = 0x12000, scoped, tag = 'internal scratch']
  %s0 = inlined_call_operand.hbm [shape: f32[16,32], index: 0, kind: input, shape index: {}]
  %s1 = inlined_call_operand.hbm [shape: f32[32,32], index: 1, kind: input, shape index: {}]
  %s2 = inlined_call_operand.vmem [shape: f32[1,32], index: 2, kind: input, shape index: {}]
  %s3 = inlined_call_operand.vmem [shape: f32[1,32], index: 3, kind: input, shape index: {}]
  %s4 = inlined_call_operand.vmem [shape: f32[1,32], index: 4, kind: input, shape index: {}]
  %s5 = inlined_call_operand.hbm [shape: f32[16,32], index: 5, kind: output, shape index: {}]
  %s6 = sld [smem:[#allocation0]]
  $region61: #{tpu_custom_call.1} parent=0
    _
  %s8 = ssub.s32 1, %s6
  %s9 = scalar_select 0, %s8, %s6
  $region1: #{tpu_custom_call.1} parent=0
    #allocation2 [shape = 'u8[8192]{0}', space=vmem, size = 0x2000, scoped, tag = 'input window, operand 0']
    #allocation3 [shape = 's32[2]{0}', space=sflag, size = 0x8, scoped, tag = 'scoped memory for tpu_custom_call.1']
    #allocation4 [shape = 's32[2]{0}', space=sflag, size = 0x8, scoped, tag = 'scoped memory for tpu_custom_call.1']
    #allocation5 [shape = 'u8[16384]{0}', space=vmem, size = 0x4000, scoped, tag = 'input window, operand 1, single buffered']
    #allocation6 [shape = 's32[1]{0}', space=sflag, size = 0x4, scoped, tag = 'scoped memory for tpu_custom_call.1']
    #allocation7 [shape = 'u8[8192]{0}', space=vmem, size = 0x2000, scoped, tag = 'output window, operand 0']
    %10 = vsyncpa [#allocation3], 0
    %s11 = scalar_lea.sflag [#allocation3], 1
    %12 = vsyncpa %s11, 0
    %13 = vsyncpa [#allocation6], 0
    %14 = vsyncpa [#allocation4], 0
    %s15 = scalar_lea.sflag [#allocation4], 1
    %16 = vsyncpa %s15, 0
    loop: start=0, step=1, limit=4
    $region2: #{tpu_custom_call.1} parent=1 // loop_pre_header
      _
    $region3: #{tpu_custom_call.1} parent=1 // loop_header
      %s18 = sphi 0, %s22
      %p19 = scmp.ge.s32.totalorder %s18, 4
      %s28 = sphi 0, %s30
      %s31 = sphi 0, %s28
      %s32 = sphi 0, %s31
      %s48 = sphi 0, %s32
      %s52 = sphi 0, %s52
      %s54 = sphi 0, %s52
      %s55 = sphi 0, %s54
      %s69 = sphi 0, %s55
      %s73 = sphi 0, %s73
      %s75 = sphi 0, %s73
      %s76 = sphi 0, %s75
      %s90 = sphi 0, %s76
      %s94 = sphi 0, %s94
      %s96 = sphi 0, %s94
      %s97 = sphi 0, %s96
      %s111 = sphi 0, %s97
      %s115 = sphi 0, %s115
      %s117 = sphi 0, %s115
      %s118 = sphi 0, %s117
      %s132 = sphi 0, %s118
      %s138 = sphi 0, %s140
      %s141 = sphi 0, %s138
      %s142 = sphi 0, %s141
      %s158 = sphi 0, %s142
    $region4: #{tpu_custom_call.1} parent=1 // loop_header_branch
      %21 = sbr.rel (%p19) target = $region8
    $region5: #{tpu_custom_call.1} parent=1 // loop_body
      %s23 = ssub.s32 %s18, 1
      %s24 = ssub.s32 %s18, 2
      %s25 = sadd.s32 %s18, 1
      %s26 = ssub.s32 %s18, %s25
      %p27 = scmp.eq.s32.totalorder %s26, 0
      %s29 = sadd.s32 %s28, 1
      %s30 = scalar_select %p27, %s28, %s29
      %p33 = pneg %p27
      %p34 = scmp.eq.s32.totalorder %s18, 1
      %p35 = por %p33, %p34
      %p36 = scmp.ne.s32.totalorder %s28, %s31
      %p37 = scmp.eq.s32.totalorder %s18, 0
      %p38 = por %p36, %p37
      %p39 = scmp.ne.s32.totalorder %s28, %s31
      %p40 = scmp.eq.s32.totalorder %s23, 1
      %p41 = por %p39, %p40
      %p42 = scmp.ne.s32.totalorder %s31, %s32
      %p43 = scmp.eq.s32.totalorder %s23, 0
      %p44 = por %p42, %p43
      %p45 = scmp.ne.s32.totalorder %s31, %s32
      %p46 = scmp.eq.s32.totalorder %s24, 1
      %p47 = por %p45, %p46
      %p49 = scmp.ne.s32.totalorder %s32, %s48
      %p50 = scmp.eq.s32.totalorder %s24, 0
      %p51 = por %p49, %p50
      %s53 = sadd.s32 %s52, 1
      %p56 = scmp.eq.s32.totalorder %s18, 1
      %p57 = scmp.ne.s32.totalorder %s52, %s54
      %p58 = scmp.eq.s32.totalorder %s18, 0
      %p59 = por %p57, %p58
      %p60 = scmp.ne.s32.totalorder %s52, %s54
      %p61 = scmp.eq.s32.totalorder %s23, 1
      %p62 = por %p60, %p61
      %p63 = scmp.ne.s32.totalorder %s54, %s55
      %p64 = scmp.eq.s32.totalorder %s23, 0
      %p65 = por %p63, %p64
      %p66 = scmp.ne.s32.totalorder %s54, %s55
      %p67 = scmp.eq.s32.totalorder %s24, 1
      %p68 = por %p66, %p67
      %p70 = scmp.ne.s32.totalorder %s55, %s69
      %p71 = scmp.eq.s32.totalorder %s24, 0
      %p72 = por %p70, %p71
      %s74 = sadd.s32 %s73, 1
      %p77 = scmp.eq.s32.totalorder %s18, 1
      %p78 = scmp.ne.s32.totalorder %s73, %s75
      %p79 = scmp.eq.s32.totalorder %s18, 0
      %p80 = por %p78, %p79
      %p81 = scmp.ne.s32.totalorder %s73, %s75
      %p82 = scmp.eq.s32.totalorder %s23, 1
      %p83 = por %p81, %p82
      %p84 = scmp.ne.s32.totalorder %s75, %s76
      %p85 = scmp.eq.s32.totalorder %s23, 0
      %p86 = por %p84, %p85
      %p87 = scmp.ne.s32.totalorder %s75, %s76
      %p88 = scmp.eq.s32.totalorder %s24, 1
      %p89 = por %p87, %p88
      %p91 = scmp.ne.s32.totalorder %s76, %s90
      %p92 = scmp.eq.s32.totalorder %s24, 0
      %p93 = por %p91, %p92
      %s95 = sadd.s32 %s94, 1
      %p98 = scmp.eq.s32.totalorder %s18, 1
      %p99 = scmp.ne.s32.totalorder %s94, %s96
      %p100 = scmp.eq.s32.totalorder %s18, 0
      %p101 = por %p99, %p100
      %p102 = scmp.ne.s32.totalorder %s94, %s96
      %p103 = scmp.eq.s32.totalorder %s23, 1
      %p104 = por %p102, %p103
      %p105 = scmp.ne.s32.totalorder %s96, %s97
      %p106 = scmp.eq.s32.totalorder %s23, 0
      %p107 = por %p105, %p106
      %p108 = scmp.ne.s32.totalorder %s96, %s97
      %p109 = scmp.eq.s32.totalorder %s24, 1
      %p110 = por %p108, %p109
      %p112 = scmp.ne.s32.totalorder %s97, %s111
      %p113 = scmp.eq.s32.totalorder %s24, 0
      %p114 = por %p112, %p113
      %s116 = sadd.s32 %s115, 1
      %p119 = scmp.eq.s32.totalorder %s18, 1
      %p120 = scmp.ne.s32.totalorder %s115, %s117
      %p121 = scmp.eq.s32.totalorder %s18, 0
      %p122 = por %p120, %p121
      %p123 = scmp.ne.s32.totalorder %s115, %s117
      %p124 = scmp.eq.s32.totalorder %s23, 1
      %p125 = por %p123, %p124
      %p126 = scmp.ne.s32.totalorder %s117, %s118
      %p127 = scmp.eq.s32.totalorder %s23, 0
      %p128 = por %p126, %p127
      %p129 = scmp.ne.s32.totalorder %s117, %s118
      %p130 = scmp.eq.s32.totalorder %s24, 1
      %p131 = por %p129, %p130
      %p133 = scmp.ne.s32.totalorder %s118, %s132
      %p134 = scmp.eq.s32.totalorder %s24, 0
      %p135 = por %p133, %p134
      %s136 = ssub.s32 %s18, %s25
      %p137 = scmp.eq.s32.totalorder %s136, 0
      %s139 = sadd.s32 %s138, 1
      %s140 = scalar_select %p137, %s138, %s139
      %p143 = pneg %p137
      %p144 = scmp.eq.s32.totalorder %s18, 1
      %p145 = por %p143, %p144
      %p146 = scmp.ne.s32.totalorder %s138, %s141
      %p147 = scmp.eq.s32.totalorder %s18, 0
      %p148 = por %p146, %p147
      %p149 = scmp.ne.s32.totalorder %s138, %s141
      %p150 = scmp.eq.s32.totalorder %s23, 1
      %p151 = por %p149, %p150
      %p152 = scmp.ne.s32.totalorder %s141, %s142
      %p153 = scmp.eq.s32.totalorder %s23, 0
      %p154 = por %p152, %p153
      %p155 = scmp.ne.s32.totalorder %s141, %s142
      %p156 = scmp.eq.s32.totalorder %s24, 1
      %p157 = por %p155, %p156
      %p159 = scmp.ne.s32.totalorder %s142, %s158
      %p160 = scmp.eq.s32.totalorder %s24, 0
      %p161 = por %p159, %p160
      %p162 = scmp.le.s32.totalorder 1, %s18
      %p163 = scmp.lt.s32.totalorder %s18, 3
      %p164 = pnand %p162, %p163
      %p165 = pneg %p164
      // Predicated region
      $region9: #{tpu_custom_call.1} parent=5 // pred_check
        _
      $region10: #{tpu_custom_call.1} parent=5 // pred_check_branch
        %167 = sbr.rel (%p164) target = $region12
      $region11: #{tpu_custom_call.1} parent=5 // pred_region
        %s168 = ssub.s32 %s18, 1
        // Predicated region
        $region13: #{tpu_custom_call.1} parent=11 // pred_check
          %p169 = pneg %p65
        $region14: #{tpu_custom_call.1} parent=11 // pred_check_branch
          %171 = sbr.rel (%p169) target = $region16
        $region15: #{tpu_custom_call.1} parent=11 // pred_region
          %s173 = ssub.s32 512, 512
          %174 = vsyncadd [#allocation6], %s173
          %s175 = sshll.u32 [#allocation5], 4
          %s176 = int_to_ptr.vmem [resolvable:$true] %s175
          %181 = dma.hbm_to_vmem [thread:$0]  %s1, 512, %s176, [#allocation6], 128, 128, 8
        $region16: #{tpu_custom_call.1} parent=11 // pred_fallthru
          _
        // Predicated region
        $region17: #{tpu_custom_call.1} parent=11 // pred_check
          %p182 = pneg %p86
        $region18: #{tpu_custom_call.1} parent=11 // pred_check_branch
          %184 = sbr.rel (%p182) target = $region20
        $region19: #{tpu_custom_call.1} parent=11 // pred_region
          _
        $region20: #{tpu_custom_call.1} parent=11 // pred_fallthru
          _
        // Predicated region
        $region21: #{tpu_custom_call.1} parent=11 // pred_check
          %p185 = pneg %p107
        $region22: #{tpu_custom_call.1} parent=11 // pred_check_branch
          %187 = sbr.rel (%p185) target = $region24
        $region23: #{tpu_custom_call.1} parent=11 // pred_region
          _
        $region24: #{tpu_custom_call.1} parent=11 // pred_fallthru
          _
        // Predicated region
        $region25: #{tpu_custom_call.1} parent=11 // pred_check
          %p188 = pneg %p128
        $region26: #{tpu_custom_call.1} parent=11 // pred_check_branch
          %190 = sbr.rel (%p188) target = $region28
        $region27: #{tpu_custom_call.1} parent=11 // pred_region
          _
        $region28: #{tpu_custom_call.1} parent=11 // pred_fallthru
          _
      $region12: #{tpu_custom_call.1} parent=5 // pred_fallthru
        _
      %p191 = scmp.lt.s32.totalorder %s18, 2
      // Predicated region
      $region29: #{tpu_custom_call.1} parent=5 // pred_check
        %p192 = pneg %p191
      $region30: #{tpu_custom_call.1} parent=5 // pred_check_branch
        %194 = sbr.rel (%p192) target = $region32
      $region31: #{tpu_custom_call.1} parent=5 // pred_region
        // Predicated region
        $region33: #{tpu_custom_call.1} parent=31 // pred_check
          %p195 = pneg %p38
        $region34: #{tpu_custom_call.1} parent=31 // pred_check_branch
          %197 = sbr.rel (%p195) target = $region36
        $region35: #{tpu_custom_call.1} parent=31 // pred_region
          %s198 = sand.u32 %s28, 1
          %s199 = scalar_lea.sflag [#allocation3], %s198
          %s200 = sand.u32 %s28, 1
          %s201 = smul.addr %s200, 8
          %s202 = scalar_lea.vmem [#allocation2], %s201
          %s204 = ssub.s32 128, 128
          %205 = vsyncadd %s199, %s204
          %s206 = smul.addr %s18, 128
          %s207 = scalar_lea.hbm %s0, %s206
          %s209 = sshll.u32 %s202, 4
          %s210 = int_to_ptr.vmem [resolvable:$true] %s209
          %212 = dma.hbm_to_vmem [thread:$0]  %s207, 128, %s210, %s199
        $region36: #{tpu_custom_call.1} parent=31 // pred_fallthru
          _
      $region32: #{tpu_custom_call.1} parent=5 // pred_fallthru
        _
      %p213 = scmp.le.s32.totalorder 1, %s18
      %p214 = scmp.lt.s32.totalorder %s18, 3
      %p215 = pnand %p213, %p214
      %p216 = pneg %p215
      // Predicated region
      $region37: #{tpu_custom_call.1} parent=5 // pred_check
        _
      $region38: #{tpu_custom_call.1} parent=5 // pred_check_branch
        %218 = sbr.rel (%p215) target = $region40
      $region39: #{tpu_custom_call.1} parent=5 // pred_region
        %s219 = ssub.s32 %s18, 1
        %s220 = sand.u32 %s31, 1
        %s221 = scalar_lea.sflag [#allocation3], %s220
        %s222 = sand.u32 %s31, 1
        %s223 = smul.addr %s222, 8
        %s224 = scalar_lea.vmem [#allocation2], %s223
        // Predicated region
        $region41: #{tpu_custom_call.1} parent=39 // pred_check
          %p225 = pneg %p44
        $region42: #{tpu_custom_call.1} parent=39 // pred_check_branch
          %227 = sbr.rel (%p225) target = $region44
        $region43: #{tpu_custom_call.1} parent=39 // pred_region
          %228 = dma.done %s221, 128
        $region44: #{tpu_custom_call.1} parent=39 // pred_fallthru
          _
        // Predicated region
        $region45: #{tpu_custom_call.1} parent=39 // pred_check
          %p229 = pneg %p65
        $region46: #{tpu_custom_call.1} parent=39 // pred_check_branch
          %231 = sbr.rel (%p229) target = $region48
        $region47: #{tpu_custom_call.1} parent=39 // pred_region
          %232 = dma.done [#allocation6], 512
        $region48: #{tpu_custom_call.1} parent=39 // pred_fallthru
          _
        %s233 = sand.u32 %s31, 1
        %s234 = scalar_lea.sflag [#allocation3], %s233
        %s235 = sand.u32 %s31, 1
        %s236 = smul.addr %s235, 8
        %s237 = scalar_lea.vmem [#allocation2], %s236
        %p238 = pneg %p44
        %p239 = pneg %p41
        %p240 = pneg %p65
        %p241 = pneg %p62
        %p242 = pneg %p86
        %p243 = pneg %p83
        %p244 = pneg %p107
        %p245 = pneg %p104
        %p246 = pneg %p128
        %p247 = pneg %p125
        %p248 = pneg %p154
        %p249 = pneg %p151
        %s250 = sand.u32 %s141, 1
        %s251 = scalar_lea.sflag [#allocation4], %s250
        %s252 = sand.u32 %s141, 1
        %s253 = smul.addr %s252, 8
        %s254 = scalar_lea.vmem [#allocation7], %s253
        %v255 = vld [vmem:[#allocation5] sm:$0xff]
        %v256 = vld [vmem:[#allocation5 + $0x8] sm:$0xff]
        %v257 = vld [vmem:[#allocation5 + $0x10] sm:$0xff]
        %v258 = vld [vmem:[#allocation5 + $0x18] sm:$0xff]
        %v259 = vld [vmem:[%s2] sm:$0x1]
        %v260 = vld [vmem:[%s3] sm:$0x1]
        %v261 = vld [vmem:[%s4] sm:$0x1]
        %v262 = vld [vmem:[%s224] sm:$0xff]
        %v264 = vlaneseq
        %v265 = vshrl.u32 %v264, 7
        %v266 = vsub.s32 0, %v265
        %v267 = vrot.slane %v259, %v266
        %vm269 = vcmask 261120
        %v271 = vsel %vm269, %v262, 0
        %273 = vmatprep.subr.mxu0 0.0
        %274 = vmatpush1.msra.mxu0 %v255
        %275 = vmatprep.subr.mxu0 0.0
        %276 = vmatpush1.msra.mxu0 %v256
        %277 = vmatprep.subr.mxu0 0.0
        %278 = vmatpush1.msra.mxu0 %v257
        %279 = vmatprep.subr.mxu0 0.0
        %280 = vmatpush1.msra.mxu0 %v258
        %281 = vmatprep.subr.mxu0 0.0
        %282 = vmatpush1.msra.mxu0 0.0
        %283 = vmatprep.subr.mxu0 0.0
        %284 = vmatpush1.msra.mxu0 0.0
        %285 = vmatprep.subr.mxu0 0.0
        %286 = vmatpush1.msra.mxu0 0.0
        %287 = vmatprep.subr.mxu0 0.0
        %288 = vmatpush1.msra.mxu0 0.0
        %289 = vmatprep.subr.mxu0 0.0
        %290 = vmatpush1.msra.mxu0 0.0
        %291 = vmatprep.subr.mxu0 0.0
        %292 = vmatpush1.msra.mxu0 0.0
        %293 = vmatprep.subr.mxu0 0.0
        %294 = vmatpush1.msra.mxu0 0.0
        %295 = vmatprep.subr.mxu0 0.0
        %296 = vmatpush1.msra.mxu0 0.0
        %297 = vmatprep.subr.mxu0 0.0
        %298 = vmatpush1.msra.mxu0 0.0
        %299 = vmatprep.subr.mxu0 0.0
        %300 = vmatpush1.msra.mxu0 0.0
        %301 = vmatprep.subr.mxu0 0.0
        %302 = vmatpush1.msra.mxu0 0.0
        %303 = vmatprep.subr.mxu0 0.0
        %304 = vmatpush1.msra.mxu0 0.0
        %305 = vmatprep.subr.mxu0 0.0
        %306 = vmatpush1.msra.mxu0 0.0
        %307 = vmatprep.subr.mxu0 0.0
        %308 = vmatpush1.msra.mxu0 0.0
        %309 = vmatprep.subr.mxu0 0.0
        %310 = vmatpush1.msra.mxu0 0.0
        %311 = vmatprep.subr.mxu0 0.0
        %312 = vmatpush1.msra.mxu0 0.0
        %313 = vmatprep.subr.mxu0 0.0
        %314 = vmatpush1.msra.mxu0 0.0
        %315 = vmatprep.subr.mxu0 0.0
        %316 = vmatpush1.msra.mxu0 0.0
        %317 = vmatprep.subr.mxu0 0.0
        %318 = vmatpush1.msra.mxu0 0.0
        %319 = vmatprep.subr.mxu0 0.0
        %320 = vmatpush1.msra.mxu0 0.0
        %321 = vmatprep.subr.mxu0 0.0
        %322 = vmatpush1.msra.mxu0 0.0
        %323 = vmatprep.subr.mxu0 0.0
        %324 = vmatpush1.msra.mxu0 0.0
        %325 = vmatprep.subr.mxu0 0.0
        %326 = vmatpush1.msra.mxu0 0.0
        %327 = vmatprep.subr.mxu0 0.0
        %328 = vmatpush1.msra.mxu0 0.0
        %329 = vmatprep.subr.mxu0 0.0
        %330 = vmatpush1.msra.mxu0 0.0
        %331 = vmatprep.subr.mxu0 0.0
        %332 = vmatpush1.msra.mxu0 0.0
        %333 = vmatprep.subr.mxu0 0.0
        %334 = vmatpush1.msra.mxu0 0.0
        %335 = vmatprep.subr.mxu0 0.0
        %336 = vmatpush1.msra.mxu0 0.0
        %337 = vmatprep.mubr.f32.mxu0 0.0
        %338 = vmatmul.mubr.f32.gmra.mrb[0].mxu0 %v271
        %v339 = vpop.f32.mrb[0].mxu0
        %v340 = vadd.f32 %v267, %v339
        %v341 = vpop.f32.mrb[0].mxu0
        %342 = vdwg.mxu0
        %v343 = vmul.f32 %v340, 0.5
        %v344 = vmul.f32 %v340, 0.70710677
        %v345 = verf.f32.pop %v344
        %v346 = vadd.f32 %v345, 1.0
        %v347 = vmul.f32 %v343, %v346
        %v348 = vsel %vm269, %v347, 0.0
        %349 = vadd.xlane.f32.xlu0 %v348
        %v350 = vpop.xlane.xlu0 %349
        %v351 = vmul.f32 %v350, 0.03125
        %v352 = vmul.f32 %v347, %v347
        %v353 = vsel %vm269, %v352, 0.0
        %354 = vadd.xlane.f32.xlu0 %v353
        %v355 = vpop.xlane.xlu0 %354
        %v356 = vmul.f32 %v355, 0.03125
        %v357 = vmul.f32 %v351, %v351
        %v358 = vsub.f32 %v356, %v357
        %v359 = vmax.f32 %v358, 0.0
        %v360 = vsub.f32 %v347, %v351
        %v361 = vadd.f32 %v359, 1e-12
        %v362 = vrsqrt.pop %v361
        %v363 = vmul.f32 %v360, %v362
        %v365 = vlaneseq
        %v366 = vshrl.u32 %v365, 7
        %v367 = vsub.s32 0, %v366
        %v368 = vrot.slane %v260, %v367
        %v370 = vmul.f32 %v363, %v368
        %v372 = vlaneseq
        %v373 = vshrl.u32 %v372, 7
        %v374 = vsub.s32 0, %v373
        %v375 = vrot.slane %v261, %v374
        %v377 = vadd.f32 %v370, %v375
        %378 = vst.msk [vmem:[%s254] sm:$0xff] %vm269, %v377
        %s379 = sand.u32 %s141, 1
        %s380 = scalar_lea.sflag [#allocation4], %s379
        %s381 = sand.u32 %s141, 1
        %s382 = smul.addr %s381, 8
        %s383 = scalar_lea.vmem [#allocation7], %s382
        // Predicated region
        $region49: #{tpu_custom_call.1} parent=39 // pred_check
          %p384 = pneg %p151
        $region50: #{tpu_custom_call.1} parent=39 // pred_check_branch
          %386 = sbr.rel (%p384) target = $region52
        $region51: #{tpu_custom_call.1} parent=39 // pred_region
          %s388 = ssub.s32 128, 128
          %389 = vsyncadd %s380, %s388
          %s390 = smul.addr %s23, 128
          %s391 = scalar_lea.hbm %s5, %s390
          %s393 = sshll.u32 %s383, 4
          %s394 = int_to_ptr.vmem [resolvable:$true] %s393
          %396 = dma.vmem_to_hbm [thread:$0]  %s394, 128, %s391, %s380
        $region52: #{tpu_custom_call.1} parent=39 // pred_fallthru
          _
      $region40: #{tpu_custom_call.1} parent=5 // pred_fallthru
        _
      %p397 = scmp.le.s32.totalorder 2, %s18
      // Predicated region
      $region53: #{tpu_custom_call.1} parent=5 // pred_check
        %p398 = pneg %p397
      $region54: #{tpu_custom_call.1} parent=5 // pred_check_branch
        %400 = sbr.rel (%p398) target = $region56
      $region55: #{tpu_custom_call.1} parent=5 // pred_region
        %s401 = ssub.s32 %s18, 2
        // Predicated region
        $region57: #{tpu_custom_call.1} parent=55 // pred_check
          %p402 = pneg %p157
        $region58: #{tpu_custom_call.1} parent=55 // pred_check_branch
          %404 = sbr.rel (%p402) target = $region60
        $region59: #{tpu_custom_call.1} parent=55 // pred_region
          %s405 = sand.u32 %s142, 1
          %s406 = scalar_lea.sflag [#allocation4], %s405
          %s407 = sand.u32 %s142, 1
          %s408 = smul.addr %s407, 8
          %s409 = scalar_lea.vmem [#allocation7], %s408
          %410 = dma.done %s406, 128
        $region60: #{tpu_custom_call.1} parent=55 // pred_fallthru
          _
      $region56: #{tpu_custom_call.1} parent=5 // pred_fallthru
        _
    $region6: #{tpu_custom_call.1} parent=1 // loop_footer
      %s22 = sadd.s32 1, %s18
    $region7: #{tpu_custom_call.1} parent=1 // loop_footer_branch
      %17 = sbr.rel target = $region3
    $region8: #{tpu_custom_call.1} parent=1 // loop_exit
      _
    %411 = vsyncpa [#allocation3], 1
    %s412 = scalar_lea.sflag [#allocation3], 1
    %413 = vsyncpa %s412, 1
    %414 = vsyncpa [#allocation6], 1
    %415 = vsyncpa [#allocation4], 1
    %s416 = scalar_lea.sflag [#allocation4], 1
    %417 = vsyncpa %s416, 1

</llo_original>
